<compile_context>
chip_gen: v5e
topology: v5e:2x2
jax: 0.10.0
libtpu: 0.0.40
codegen_flags: <defaults>
</compile_context>

<pallas_src>
import jax
import jax.numpy as jnp
from jax.experimental import pallas as pl
from jax.experimental.pallas import tpu as pltpu


def _mean_pool_kernel(x_ref, mask_ref, o_ref, cnt_ref):
    # x_ref:    (TB, TS, H) input block (bf16/f32)
    # mask_ref: (TB, TS)    mask block
    # o_ref:    (TB, H)     f32 output block, resident across the seq axis
    # cnt_ref:  (TB, 1)     f32 VMEM token-count accumulator
    s = pl.program_id(1)

    @pl.when(s == 0)
    def _init():
        o_ref[...] = jnp.zeros_like(o_ref)
        cnt_ref[...] = jnp.zeros_like(cnt_ref)

    # VPU path: mask-multiply + f32 sum over the sequence (sublane) axis.
    m = mask_ref[...].astype(jnp.float32)                     # (TB, TS)
    x = x_ref[...].astype(jnp.float32)                        # (TB, TS, H)
    o_ref[...] += jnp.sum(x * m[:, :, None], axis=1)          # (TB, H) f32
    cnt_ref[...] += jnp.sum(m, axis=1, keepdims=True)         # (TB, 1)

    @pl.when(s == pl.num_programs(1) - 1)
    def _finalize():
        denom = jnp.maximum(cnt_ref[...], 1e-9)               # torch.clamp(min=1e-9)
        o_ref[...] = o_ref[...] / denom                       # exact divide (runs once)


def _vmem_budget_bytes():
    """Usable scoped-VMEM budget: 3/4 of physical, capped at 96 MiB."""
    try:
        cap = int(pltpu.get_tpu_info().vmem_capacity_bytes)
    except Exception:
        cap = 64 << 20  # conservative fallback = v7x per-TensorCore VMEM
    return min((cap * 3) // 4, 96 << 20)


def _batch_tile_candidates(B):
    """Sublane-legal batch tiles: multiple-of-8 divisors of B, plus B itself."""
    cands = [d for d in range(8, B + 1, 8) if B % d == 0]
    if B not in cands:
        cands.append(B)  # full-extent leading block dim is always legal
    return sorted(set(cands), reverse=True)


def _pick_tiles(B, S, H, itemsize, x_block_bytes):
    """Choose (tb, ts, S_padded) so the x block is ~x_block_bytes."""
    cands = _batch_tile_candidates(B)
    seq_bytes = S * H * itemsize

    # Full-sequence path: largest batch fold that fits the budget.
    for tb in cands:
        if tb * seq_bytes <= x_block_bytes:
            # Keep >= 2 batch grid steps when B is large enough (v7x megacore).
            if tb == B and B >= 16:
                for tb2 in cands:
                    if tb2 <= B // 2 and tb2 * seq_bytes <= x_block_bytes:
                        tb = tb2
                        break
            return tb, S, S

    # Sequence-tiled path: fold >= 8 batch rows (sublane-aligned mask/out),
    # shrink ts (multiple of 128) to fit, pad S up to a multiple of ts.
    tb = min(cands)
    max_ts = max(128, (x_block_bytes // max(1, tb * H * itemsize)) // 128 * 128)
    if max_ts >= S:
        return tb, S, S
    ts = 0
    t = max_ts
    while t >= 128:                      # prefer a divisor of S (no padding)
        if S % t == 0:
            ts = t
            break
        t -= 128
    if ts == 0:
        ts = max_ts
    s_pad = pl.cdiv(S, ts) * ts
    return tb, ts, s_pad


def mean_pooling(last_hidden_state, attention_mask, *, target_block_bytes=8 << 20):
    """Masked mean pooling over the sequence axis.

    last_hidden_state: (B, S, H)
    attention_mask:    (B, S)
    returns:           (B, H) float32
    """
    B, S, H = last_hidden_state.shape
    assert attention_mask.shape == (B, S)
    if attention_mask.dtype == jnp.bool_:
        attention_mask = attention_mask.astype(jnp.int32)
    itemsize = jnp.dtype(last_hidden_state.dtype).itemsize

    budget = _vmem_budget_bytes()
    x_block_bytes = min(int(target_block_bytes), budget // 4)  # 2x buffered x must fit
    tb, ts, s_pad = _pick_tiles(B, S, H, itemsize, x_block_bytes)

    if s_pad != S:
        # Zero-padded rows have mask 0 -> contribute nothing; result is exact.
        pad = s_pad - S
        last_hidden_state = jnp.pad(last_hidden_state, ((0, 0), (0, pad), (0, 0)))
        attention_mask = jnp.pad(attention_mask, ((0, 0), (0, pad)))

    grid = (B // tb, s_pad // ts)

    # Explicit VMEM limit (v5e default scope is 16 MiB; v7x physical is 64 MiB).
    x_blk = tb * ts * H * itemsize
    m_blk = tb * ts * jnp.dtype(attention_mask.dtype).itemsize
    needed = 2 * x_blk + 2 * m_blk + tb * H * 4 + tb * 128 * 4
    vmem_limit = int(min(budget, max(48 << 20, 2 * needed)))

    return pl.pallas_call(
        _mean_pool_kernel,
        out_shape=jax.ShapeDtypeStruct((B, H), jnp.float32),
        grid_spec=pltpu.PrefetchScalarGridSpec(
            num_scalar_prefetch=0,
            grid=grid,
            in_specs=[
                pl.BlockSpec((tb, ts, H), lambda b, s: (b, s, 0)),
                pl.BlockSpec((tb, ts), lambda b, s: (b, s)),
            ],
            out_specs=pl.BlockSpec((tb, H), lambda b, s: (b, 0)),
            scratch_shapes=[
                pltpu.VMEM((tb, 1), jnp.float32),
            ],
        ),
        compiler_params=pltpu.CompilerParams(
            dimension_semantics=("parallel", "arbitrary"),
            vmem_limit_bytes=vmem_limit,
        ),
    )(last_hidden_state, attention_mask)


if __name__ == "__main__":
    key = jax.random.PRNGKey(0)
    k1, k2 = jax.random.split(key)

    # --- small test at the module's natural shapes -------------------------
    B, S, H = 2, 8, 32
    x = jax.random.normal(k1, (B, S, H), dtype=jnp.float32)
    lengths = jnp.array([[5], [8]])
    mask = (jnp.arange(S)[None, :] < lengths).astype(jnp.int32)  # (B, S)

    out = jax.block_until_ready(mean_pooling(x, mask))

    mf = mask.astype(jnp.float32)[:, :, None]
    ref = jnp.sum(x * mf, axis=1) / jnp.maximum(jnp.sum(mf, axis=1), 1e-9)
    assert out.shape == (B, H) and out.dtype == jnp.float32
    assert jnp.allclose(out, ref, atol=1e-5, rtol=1e-5), float(jnp.abs(out - ref).max())

    # --- second check: sequence-tiled (tb=8) + padded-S accumulator path ---
    B2, S2, H2 = 16, 320, 128               # S2 not a multiple of 128 -> padded to 384
    x2 = jax.random.normal(k2, (B2, S2, H2), dtype=jnp.float32)
    lengths2 = (jnp.arange(B2) * 21 % S2 + 1)[:, None]
    mask2 = (jnp.arange(S2)[None, :] < lengths2).astype(jnp.int32)

    out2 = jax.block_until_ready(
        mean_pooling(x2, mask2, target_block_bytes=512 * 1024)  # forces tb=8, ts=128, grid=(2,3)
    )
    mf2 = mask2.astype(jnp.float32)[:, :, None]
    ref2 = jnp.sum(x2 * mf2, axis=1) / jnp.maximum(jnp.sum(mf2, axis=1), 1e-9)
    assert jnp.allclose(out2, ref2, atol=1e-4, rtol=1e-4), float(jnp.abs(out2 - ref2).max())

    print("KERNEL_OK")
</pallas_src>

<mosaic_0001>
module attributes {stable_mosaic.version = 11 : i64} {
  func.func @_mean_pool_kernel(%arg0: i32, %arg1: i32, %arg2: memref<2x8x32xf32, #tpu.memory_space<vmem>>, %arg3: memref<2x8xi32, #tpu.memory_space<vmem>>, %arg4: memref<2x32xf32, #tpu.memory_space<vmem>>, %arg5: memref<2x1xf32, #tpu.memory_space<vmem>>) attributes {dimension_semantics = [#tpu.dimension_semantics<parallel>, #tpu.dimension_semantics<arbitrary>], iteration_bounds = array<i64: 1, 1>, scalar_prefetch = 0 : i64, scratch_operands = 1 : i64, tpu.core_type = #tpu.core_type<tc>, window_params = [{transform_indices = @transform_0, window_bounds = array<i64: 2, 8, 32>}, {transform_indices = @transform_1, window_bounds = array<i64: 2, 8>}, {transform_indices = @transform_2, window_bounds = array<i64: 2, 32>}]} {
    %c0_i32 = arith.constant 0 : i32
    %0 = arith.cmpi eq, %arg1, %c0_i32 : i32
    %1 = arith.extui %0 : i1 to i32
    %c0_i32_0 = arith.constant 0 : i32
    %2 = arith.cmpi ne, %1, %c0_i32_0 : i32
    scf.if %2 {
      %cst_16 = arith.constant 0.000000e+00 : f32
      %21 = vector.broadcast %cst_16 : f32 to vector<2x32xf32>
      %c0_17 = arith.constant 0 : index
      %c0_18 = arith.constant 0 : index
      %22 = vector.load %arg4[%c0_17, %c0_18] : memref<2x32xf32, #tpu.memory_space<vmem>>, vector<2x32xf32>
      tpu.vector_store %arg4[%c0_17, %c0_18], %21 {strides = array<i32>} : memref<2x32xf32, #tpu.memory_space<vmem>>, vector<2x32xf32>,
      %cst_19 = arith.constant 0.000000e+00 : f32
      %23 = vector.broadcast %cst_19 : f32 to vector<2x1xf32>
      %c0_20 = arith.constant 0 : index
      %c0_21 = arith.constant 0 : index
      %24 = vector.load %arg5[%c0_20, %c0_21] : memref<2x1xf32, #tpu.memory_space<vmem>>, vector<2x1xf32>
      tpu.vector_store %arg5[%c0_20, %c0_21], %23 {strides = array<i32>} : memref<2x1xf32, #tpu.memory_space<vmem>>, vector<2x1xf32>,
    } else {
    }
    %c0 = arith.constant 0 : index
    %c0_1 = arith.constant 0 : index
    %3 = vector.load %arg3[%c0, %c0_1] : memref<2x8xi32, #tpu.memory_space<vmem>>, vector<2x8xi32>
    %4 = arith.sitofp %3 : vector<2x8xi32> to vector<2x8xf32>
    %c0_2 = arith.constant 0 : index
    %c0_3 = arith.constant 0 : index
    %c0_4 = arith.constant 0 : index
    %5 = vector.load %arg2[%c0_2, %c0_3, %c0_4] : memref<2x8x32xf32, #tpu.memory_space<vmem>>, vector<2x8x32xf32>
    %c0_5 = arith.constant 0 : index
    %c0_6 = arith.constant 0 : index
    %6 = vector.load %arg4[%c0_5, %c0_6] : memref<2x32xf32, #tpu.memory_space<vmem>>, vector<2x32xf32>
    %7 = vector.shape_cast %4 : vector<2x8xf32> to vector<2x8x1xf32>
    %8 = vector.broadcast %7 : vector<2x8x1xf32> to vector<2x8x32xf32>
    %9 = arith.mulf %5, %8 : vector<2x8x32xf32>
    %cst = arith.constant dense<0.000000e+00> : vector<2x32xf32>
    %10 = vector.multi_reduction <add>, %9, %cst [1] : vector<2x8x32xf32> to vector<2x32xf32>
    %11 = arith.addf %6, %10 : vector<2x32xf32>
    %c0_7 = arith.constant 0 : index
    %c0_8 = arith.constant 0 : index
    %12 = vector.load %arg4[%c0_7, %c0_8] : memref<2x32xf32, #tpu.memory_space<vmem>>, vector<2x32xf32>
    tpu.vector_store %arg4[%c0_7, %c0_8], %11 {strides = array<i32>} : memref<2x32xf32, #tpu.memory_space<vmem>>, vector<2x32xf32>,
    %c0_9 = arith.constant 0 : index
    %c0_10 = arith.constant 0 : index
    %13 = vector.load %arg5[%c0_9, %c0_10] : memref<2x1xf32, #tpu.memory_space<vmem>>, vector<2x1xf32>
    %cst_11 = arith.constant dense<0.000000e+00> : vector<2xf32>
    %14 = vector.multi_reduction <add>, %4, %cst_11 [1] : vector<2x8xf32> to vector<2xf32>
    %15 = vector.shape_cast %14 : vector<2xf32> to vector<2x1xf32>
    %16 = arith.addf %13, %15 : vector<2x1xf32>
    %c0_12 = arith.constant 0 : index
    %c0_13 = arith.constant 0 : index
    %17 = vector.load %arg5[%c0_12, %c0_13] : memref<2x1xf32, #tpu.memory_space<vmem>>, vector<2x1xf32>
    tpu.vector_store %arg5[%c0_12, %c0_13], %16 {strides = array<i32>} : memref<2x1xf32, #tpu.memory_space<vmem>>, vector<2x1xf32>,
    %c0_i32_14 = arith.constant 0 : i32
    %18 = arith.cmpi eq, %arg1, %c0_i32_14 : i32
    %19 = arith.extui %18 : i1 to i32
    %c0_i32_15 = arith.constant 0 : i32
    %20 = arith.cmpi ne, %19, %c0_i32_15 : i32
    scf.if %20 {
      %c0_16 = arith.constant 0 : index
      %c0_17 = arith.constant 0 : index
      %21 = vector.load %arg5[%c0_16, %c0_17] : memref<2x1xf32, #tpu.memory_space<vmem>>, vector<2x1xf32>
      %cst_18 = arith.constant 9.99999971E-10 : f32
      %22 = vector.broadcast %cst_18 : f32 to vector<2x1xf32>
      %23 = arith.maximumf %21, %22 : vector<2x1xf32>
      %c0_19 = arith.constant 0 : index
      %c0_20 = arith.constant 0 : index
      %24 = vector.load %arg4[%c0_19, %c0_20] : memref<2x32xf32, #tpu.memory_space<vmem>>, vector<2x32xf32>
      %25 = vector.broadcast %23 : vector<2x1xf32> to vector<2x32xf32>
      %26 = arith.divf %24, %25 : vector<2x32xf32>
      %c0_21 = arith.constant 0 : index
      %c0_22 = arith.constant 0 : index
      %27 = vector.load %arg4[%c0_21, %c0_22] : memref<2x32xf32, #tpu.memory_space<vmem>>, vector<2x32xf32>
      tpu.vector_store %arg4[%c0_21, %c0_22], %26 {strides = array<i32>} : memref<2x32xf32, #tpu.memory_space<vmem>>, vector<2x32xf32>,
    } else {
    }
    return
  }
  func.func @transform_0(%arg0: i32, %arg1: i32) -> (i32, i32, i32) {
    %c0_i32 = arith.constant 0 : i32
    %c0_i32_0 = arith.constant 0 : i32
    return %arg0, %arg1, %c0_i32 : i32, i32, i32
  }
  func.func @transform_1(%arg0: i32, %arg1: i32) -> (i32, i32) {
    %c0_i32 = arith.constant 0 : i32
    return %arg0, %arg1 : i32, i32
  }
  func.func @transform_2(%arg0: i32, %arg1: i32) -> (i32, i32) {
    %c0_i32 = arith.constant 0 : i32
    %c0_i32_0 = arith.constant 0 : i32
    return %arg0, %c0_i32 : i32, i32
  }
}

</mosaic_0001>

<llo_original>
// kernel: tpu_custom_call.1
$region0: #{tpu_custom_call.1}
  #allocation0 [shape = 'u32[]', space=smem, size = 0x4, offset = 0x4, fixed_abs, tag = 'smem constant byte address 0x4 - core index']
  #allocation1 [shape = 'u32[72,128]{1,0:T(1,128)}', space=vmem, size = 0x9000, scoped, tag = 'internal scratch']
  #allocation2 [shape = 'f32[2,1]{1,0:T(2,128)}', space=vmem, size = 0x400, scoped, tag = 'scratch operand']
  %s0 = inlined_call_operand.hbm [shape: f32[2,8,32], index: 0, kind: input, shape index: {}]
  %s1 = inlined_call_operand.hbm [shape: s32[2,8], index: 1, kind: input, shape index: {}]
  %s2 = inlined_call_operand.hbm [shape: f32[2,32], index: 2, kind: output, shape index: {}]
  %s3 = sld [smem:[#allocation0]]
  $region34: #{tpu_custom_call.1} parent=0
    _
  %s5 = ssub.s32 1, %s3
  %s6 = scalar_select 0, %s5, %s3
  $region1: #{tpu_custom_call.1} parent=0
    #allocation3 [shape = 'u8[8192]{0}', space=vmem, size = 0x2000, scoped, tag = 'input window, operand 0, single buffered']
    #allocation4 [shape = 's32[1]{0}', space=sflag, size = 0x4, scoped, tag = 'scoped memory for tpu_custom_call.1']
    #allocation5 [shape = 's32[1]{0}', space=sflag, size = 0x4, scoped, tag = 'scoped memory for tpu_custom_call.1']
    #allocation6 [shape = 'u8[1024]{0}', space=vmem, size = 0x400, scoped, tag = 'input window, operand 1, single buffered']
    #allocation7 [shape = 's32[1]{0}', space=sflag, size = 0x4, scoped, tag = 'scoped memory for tpu_custom_call.1']
    #allocation8 [shape = 'u8[1024]{0}', space=vmem, size = 0x400, scoped, tag = 'output window, operand 0, single buffered']
    %7 = vsyncpa [#allocation4], 0
    %8 = vsyncpa [#allocation7], 0
    %9 = vsyncpa [#allocation5], 0
    // Predicated region
    $region2: #{tpu_custom_call.1} parent=1 // pred_check
      _
    $region3: #{tpu_custom_call.1} parent=1 // pred_check_branch
      %11 = sbr.rel (0) target = $region5
    $region4: #{tpu_custom_call.1} parent=1 // pred_region
      %13 = vsyncadd [#allocation4], 0
      %s14 = sshll.u32 %s0, 4
      %s15 = int_to_ptr.hbm [resolvable:$true] %s14
      %s16 = sshll.u32 [#allocation3], 4
      %s17 = int_to_ptr.vmem [resolvable:$true] %s16
      %22 = dma.hbm_to_vmem [thread:$0]  %s15, 256, %s17, [#allocation4], 128, 128, 8
    $region5: #{tpu_custom_call.1} parent=1 // pred_fallthru
      _
    // Predicated region
    $region6: #{tpu_custom_call.1} parent=1 // pred_check
      _
    $region7: #{tpu_custom_call.1} parent=1 // pred_check_branch
      %24 = sbr.rel (0) target = $region9
    $region8: #{tpu_custom_call.1} parent=1 // pred_region
      %26 = vsyncadd [#allocation7], 0
      %s28 = sshll.u32 %s1, 4
      %s29 = int_to_ptr.hbm [resolvable:$true] %s28
      %s30 = sshll.u32 [#allocation6], 4
      %s31 = int_to_ptr.vmem [resolvable:$true] %s30
      %33 = dma.hbm_to_vmem [thread:$0]  %s29, 32, %s31, [#allocation7]
    $region9: #{tpu_custom_call.1} parent=1 // pred_fallthru
      _
    // Predicated region
    $region10: #{tpu_custom_call.1} parent=1 // pred_check
      _
    $region11: #{tpu_custom_call.1} parent=1 // pred_check_branch
      %35 = sbr.rel (0) target = $region13
    $region12: #{tpu_custom_call.1} parent=1 // pred_region
      %37 = dma.done [#allocation4], 256
    $region13: #{tpu_custom_call.1} parent=1 // pred_fallthru
      _
    // Predicated region
    $region14: #{tpu_custom_call.1} parent=1 // pred_check
      _
    $region15: #{tpu_custom_call.1} parent=1 // pred_check_branch
      %39 = sbr.rel (0) target = $region17
    $region16: #{tpu_custom_call.1} parent=1 // pred_region
      %41 = dma.done [#allocation7], 32
    $region17: #{tpu_custom_call.1} parent=1 // pred_fallthru
      _
    %p42 = scmp.eq.s32.totalorder 0, 0
    // Predicated region
    $region18: #{tpu_custom_call.1} parent=1 // pred_check
      %p43 = pneg %p42
    $region19: #{tpu_custom_call.1} parent=1 // pred_check_branch
      %45 = sbr.rel (%p43) target = $region21
    $region20: #{tpu_custom_call.1} parent=1 // pred_region
      %vm46 = vcmask 254976
      %47 = vst.msk [vmem:[#allocation8] sm:$0x3] %vm46, 0.0
      %vm48 = vcmask 1024
      %49 = vst.msk [vmem:[#allocation2] sm:$0x3] %vm48, 0.0
    $region21: #{tpu_custom_call.1} parent=1 // pred_fallthru
      _
    %v50 = vld [vmem:[#allocation6] sm:$0x3]
    %v51 = vcvt.s32.f32 %v50
    %v52 = vld [vmem:[#allocation3] sm:$0xff]
    %v53 = vld [vmem:[#allocation3 + $0x8] sm:$0xff]
    %v54 = vld [vmem:[#allocation8] sm:$0x3]
    %v55 = vperm.slane %v51, 0
    %v56 = vlaneseq
    %v57 = vshrl.u32 %v56, 7
    %59 = vset.pattern.permute.xlu0 %v57
    %60 = vperm.xlu0 %59, %v55
    %v61 = vpop.permute.xlu0 %60
    %v62 = vperm.slane %v51, 1
    %v63 = vlaneseq
    %v64 = vshrl.u32 %v63, 7
    %66 = vset.pattern.permute.xlu0 %v64
    %67 = vperm.xlu0 %66, %v62
    %v68 = vpop.permute.xlu0 %67
    %v69 = vmul.f32 %v52, %v61
    %v70 = vmul.f32 %v53, %v68
    %vm71 = vcmask 261120
    %v72 = vsel %vm71, %v69, 0.0
    %v73 = vrot.slane %v72, 4
    %v74 = vadd.f32 %v72, %v73
    %v75 = vrot.slane %v74, 2
    %v76 = vadd.f32 %v74, %v75
    %v77 = vrot.slane %v76, 1
    %v78 = vadd.f32 %v76, %v77
    %v79 = vsel %vm71, %v70, 0.0
    %v80 = vrot.slane %v79, 4
    %v81 = vadd.f32 %v79, %v80
    %v82 = vrot.slane %v81, 2
    %v83 = vadd.f32 %v81, %v82
    %v84 = vrot.slane %v83, 1
    %v85 = vadd.f32 %v83, %v84
    %vm88 = vcmask 1041409
    %v89 = vsel %vm88, %v85, %v78
    %v91 = vadd.f32 %v54, %v89
    %vm92 = vcmask 254976
    %93 = vst.msk [vmem:[#allocation8] sm:$0x3] %vm92, %v91
    %v94 = vld [vmem:[#allocation2] sm:$0x3]
    %vm95 = vcmask 58368
    %v96 = vsel %vm95, %v51, 0.0
    %97 = vadd.xlane.f32.xlu0 %v96
    %v98 = vpop.xlane.xlu0 %97
    %v99 = vadd.f32 %v94, %v98
    %vm100 = vcmask 1024
    %101 = vst.msk [vmem:[#allocation2] sm:$0x3] %vm100, %v99
    // Predicated region
    $region22: #{tpu_custom_call.1} parent=1 // pred_check
      %p102 = pneg %p42
    $region23: #{tpu_custom_call.1} parent=1 // pred_check_branch
      %104 = sbr.rel (%p102) target = $region25
    $region24: #{tpu_custom_call.1} parent=1 // pred_region
      %v105 = vld [vmem:[#allocation2] sm:$0x3]
      %v106 = vmax.f32 %v105, 1e-09
      %v107 = vld [vmem:[#allocation8] sm:$0x3]
      %109 = vset.pattern.permute.xlu0 0
      %110 = vperm.xlu0 %109, %v106
      %v111 = vpop.permute.xlu0 %110
      %v113 = vrcp.pop %v111
      %v114 = vmul.f32 %v111, %v113
      %v115 = vsub.f32 1.0, %v114
      %v116 = vmul.f32 %v113, %v115
      %v117 = vadd.f32 %v113, %v116
      %vm118 = vweird.f32 %v111
      %vm119 = vweird.f32 %v113
      %vm120 = vmor %vm118, %vm119
      %v121 = vsel %vm120, %v113, %v117
      %v122 = vand.u32 2147483647, %v111
      %vm123 = vcmp.eq.f32.partialorder %v122, 8.507059e+37
      %v124 = vand.u32 %v111, 2147483648
      %v125 = vor.u32 1.1754944e-38, %v124
      %v126 = vsel %vm123, %v125, %v121
      %v127 = vmul.f32 %v107, %v126
      %128 = vst.msk [vmem:[#allocation8] sm:$0x3] %vm92, %v127
    $region25: #{tpu_custom_call.1} parent=1 // pred_fallthru
      _
    // Predicated region
    $region26: #{tpu_custom_call.1} parent=1 // pred_check
      _
    $region27: #{tpu_custom_call.1} parent=1 // pred_check_branch
      %130 = sbr.rel (0) target = $region29
    $region28: #{tpu_custom_call.1} parent=1 // pred_region
      %132 = vsyncadd [#allocation5], 0
      %s134 = sshll.u32 [#allocation8], 4
      %s135 = int_to_ptr.vmem [resolvable:$true] %s134
      %s136 = sshll.u32 %s2, 4
      %s137 = int_to_ptr.hbm [resolvable:$true] %s136
      %139 = dma.vmem_to_hbm [thread:$0]  %s135, 32, %s137, [#allocation5]
    $region29: #{tpu_custom_call.1} parent=1 // pred_fallthru
      _
    // Predicated region
    $region30: #{tpu_custom_call.1} parent=1 // pred_check
      _
    $region31: #{tpu_custom_call.1} parent=1 // pred_check_branch
      %141 = sbr.rel (0) target = $region33
    $region32: #{tpu_custom_call.1} parent=1 // pred_region
      %143 = dma.done [#allocation5], 32
    $region33: #{tpu_custom_call.1} parent=1 // pred_fallthru
      _
    %144 = vsyncpa [#allocation4], 1
    %145 = vsyncpa [#allocation7], 1
    %146 = vsyncpa [#allocation5], 1

</llo_original>
